<compile_context>
chip_gen: v7x
topology: tpu7x:2x2x1
jax: 0.10.0
libtpu: 0.0.40
codegen_flags: <defaults>
</compile_context>

<pallas_src>
import functools

import jax
import jax.numpy as jnp
from jax.experimental import pallas as pl
from jax.experimental.pallas import tpu as pltpu

LANE = 128            # lane width (last-dim tiling)
BATCH_ALIGN = 16      # bf16 packed (sublane) tile height
TILE_B_MAX = 1024     # max batch rows per grid step
MIN_GRID_STEPS = 4    # target grid steps once B is non-trivial (v7x 2 TCs + pipeline)
OUT_PAD = 128         # fused head output width (probs | value | zero padding)


def _round_up(n, m):
    return ((n + m - 1) // m) * m


def _pick_tile_b(B):
    """Largest useful batch tile that still yields multiple grid steps."""
    if B <= 4 * BATCH_ALIGN:                       # tiny batch: single latency step
        return _round_up(max(B, 1), BATCH_ALIGN)
    tile = _round_up(pl.cdiv(B, MIN_GRID_STEPS), BATCH_ALIGN)
    return max(BATCH_ALIGN, min(TILE_B_MAX, tile))


def actor_critic_kernel(dims, n_actions, x_ref, w_ref, b_ref, out_ref):
    in_d, h1, h2, h3 = dims

    # Trunk: Linear -> ReLU (x3).  bf16 operands, f32 MXU accumulation, f32 ReLU.
    x = x_ref[...].astype(jnp.bfloat16)                      # (tile_b, in_d)
    h = jnp.dot(x, w_ref[0, :in_d, :h1], preferred_element_type=jnp.float32)
    h = jnp.maximum(h + b_ref[0:1, :h1], 0.0).astype(jnp.bfloat16)

    h = jnp.dot(h, w_ref[1, :h1, :h2], preferred_element_type=jnp.float32)
    h = jnp.maximum(h + b_ref[1:2, :h2], 0.0).astype(jnp.bfloat16)

    h = jnp.dot(h, w_ref[2, :h2, :h3], preferred_element_type=jnp.float32)
    h = jnp.maximum(h + b_ref[2:3, :h3], 0.0).astype(jnp.bfloat16)

    # Fused actor|critic head: one lane-dense [tile_b, 128] matmul.
    fused = jnp.dot(h, w_ref[3, :h3, :OUT_PAD],
                    preferred_element_type=jnp.float32) + b_ref[3:4, :OUT_PAD]

    lane = jax.lax.broadcasted_iota(jnp.int32, fused.shape, 1)
    is_action = lane < n_actions

    # Numerically-stable masked softmax over the action lanes only (f32).
    masked = jnp.where(is_action, fused, jnp.float32(-1e30))
    m = jnp.max(masked, axis=-1, keepdims=True)
    e = jnp.exp(masked - m)                 # padded lanes underflow to exactly 0
    denom = jnp.sum(e, axis=-1, keepdims=True)
    probs = e / denom                       # exact divide: probs sum to 1

    # Lane n_actions carries the raw critic value; padded lanes stay 0.
    out_ref[...] = jnp.where(lane == n_actions, fused, probs).astype(jnp.bfloat16)


def init_params(key, input_dims, hidden_dim, n_actions):
    """Deterministic synthetic parameters (no checkpoint loading).
    Weights stored as [in, out]; biases as [1, out] (PyTorch Linear init range)."""
    dims = [
        (input_dims, hidden_dim),            # fc[0]
        (hidden_dim, hidden_dim // 2),       # fc[2]
        (hidden_dim // 2, hidden_dim // 4),  # fc[4]
        (hidden_dim // 4, n_actions),        # actor
        (hidden_dim // 4, 1),                # critic
    ]
    params = []
    for (fan_in, fan_out) in dims:
        key, kw, kb = jax.random.split(key, 3)
        bound = 1.0 / jnp.sqrt(jnp.float32(fan_in))
        w = jax.random.uniform(kw, (fan_in, fan_out), jnp.float32, -bound, bound)
        b = jax.random.uniform(kb, (1, fan_out), jnp.float32, -bound, bound)
        params += [w, b]
    return tuple(params)


def prepare_params(params):
    """Pack all layer weights into one bf16 stack (4, K_max, N_max) and all
    biases into one f32 stack (4, N_max).  Hidden/output feature dims are
    zero-padded to 128 lanes; the actor and critic heads are fused into one
    128-wide weight so the kernel output is a single lane-dense slab.
    The input feature dim (K of layer 0) is left UNPADDED so x streams raw."""
    (w1, b1, w2, b2, w3, b3, wa, ba, wc, bc) = params
    in_d = w1.shape[0]
    n_actions = wa.shape[1]
    assert n_actions + 1 <= OUT_PAD, "fused head assumes n_actions + 1 <= 128"

    h1 = _round_up(w1.shape[1], LANE)
    h2 = _round_up(w2.shape[1], LANE)
    h3 = _round_up(w3.shape[1], LANE)

    wh = jnp.concatenate([wa, wc], axis=1)          # [h3_real, n_actions + 1]
    bh = jnp.concatenate([ba, bc], axis=1)          # [1,       n_actions + 1]

    layers = [          # (weight, bias, K_valid, N_valid)
        (w1, b1, in_d, h1),
        (w2, b2, h1, h2),
        (w3, b3, h2, h3),
        (wh, bh, h3, OUT_PAD),
    ]
    k_max = max(k for _, _, k, _ in layers)
    n_max = max(n for _, _, _, n in layers)

    w_slab = jnp.zeros((len(layers), k_max, n_max), jnp.float32)
    b_slab = jnp.zeros((len(layers), n_max), jnp.float32)
    for l, (w, b, _, _) in enumerate(layers):
        w_slab = w_slab.at[l, :w.shape[0], :w.shape[1]].set(w)
        b_slab = b_slab.at[l, :b.shape[1]].set(b[0])
    w_slab = w_slab.astype(jnp.bfloat16)

    dims = (in_d, h1, h2, h3)
    return (w_slab, b_slab), dims, int(n_actions)


@functools.partial(jax.jit, static_argnames=("dims", "n_actions"))
def actor_critic_forward(x, w_slab, b_slab, *, dims, n_actions):
    B, in_d = x.shape
    assert in_d == dims[0], "x feature dim must match the prepared parameters"

    tile_b = _pick_tile_b(B)
    b_pad = _round_up(B, tile_b)
    grid = (b_pad // tile_b,)

    # Pad only the batch axis (feature axis streams unpadded); no-op when aligned.
    x_pad = x if b_pad == B else jnp.pad(x, ((0, b_pad - B), (0, 0)))

    in_specs = [
        pl.BlockSpec((tile_b, in_d), lambda i: (i, 0)),      # x: streamed per step
        pl.BlockSpec(w_slab.shape, lambda i: (0, 0, 0)),     # weights: VMEM-resident
        pl.BlockSpec(b_slab.shape, lambda i: (0, 0)),        # biases:  VMEM-resident
    ]
    out_specs = pl.BlockSpec((tile_b, OUT_PAD), lambda i: (i, 0))

    in_d_, h1, h2, h3 = dims
    flops = 2 * b_pad * (in_d_ * h1 + h1 * h2 + h2 * h3 + h3 * OUT_PAD)
    bytes_accessed = (x_pad.size * x_pad.dtype.itemsize
                      + w_slab.size * w_slab.dtype.itemsize
                      + b_slab.size * b_slab.dtype.itemsize
                      + b_pad * OUT_PAD * 2)
    cost = pl.CostEstimate(flops=flops,
                           transcendentals=b_pad * OUT_PAD,
                           bytes_accessed=bytes_accessed)

    out = pl.pallas_call(
        functools.partial(actor_critic_kernel, dims, n_actions),
        out_shape=jax.ShapeDtypeStruct((b_pad, OUT_PAD), jnp.bfloat16),
        grid=grid,
        in_specs=in_specs,
        out_specs=out_specs,
        compiler_params=pltpu.CompilerParams(
            dimension_semantics=("parallel",)),   # v7x: 2 TCs split the batch
        cost_estimate=cost,
    )(x_pad, w_slab, b_slab)

    probs = out[:B, :n_actions]
    value = out[:B, n_actions:n_actions + 1]
    return probs, value


def reference_forward_bf16(x, params):
    """Pure-JAX reference with the same bf16-operand / f32-accumulate recipe."""
    (w1, b1, w2, b2, w3, b3, wa, ba, wc, bc) = params

    def lin(h, w, b):
        return jnp.dot(h.astype(jnp.bfloat16), w.astype(jnp.bfloat16),
                       preferred_element_type=jnp.float32) + b

    h = jnp.maximum(lin(x, w1, b1), 0.0)
    h = jnp.maximum(lin(h, w2, b2), 0.0)
    h = jnp.maximum(lin(h, w3, b3), 0.0)
    logits = lin(h, wa, ba)
    probs = jax.nn.softmax(logits, axis=1)
    value = lin(h, wc, bc)
    return probs, value


if __name__ == "__main__":
    # Small shapes consistent with the module: batch=2, input_dims=8,
    # hidden_dim=32 (so hidden/2=16, hidden/4=8), n_actions=4.
    B, INPUT_DIMS, HIDDEN, N_ACTIONS = 2, 8, 32, 4

    key = jax.random.PRNGKey(0)
    key, kx = jax.random.split(key)
    x = jax.random.normal(kx, (B, INPUT_DIMS), jnp.float32)
    params = init_params(key, INPUT_DIMS, HIDDEN, N_ACTIONS)
    (w_slab, b_slab), dims, n_actions = prepare_params(params)

    # Small-batch (single-step latency) path.
    probs, value = actor_critic_forward(x, w_slab, b_slab,
                                        dims=dims, n_actions=n_actions)
    jax.block_until_ready((probs, value))

    ref_probs, ref_value = reference_forward_bf16(x, params)
    assert probs.shape == (B, N_ACTIONS) and value.shape == (B, 1)
    assert jnp.allclose(probs.astype(jnp.float32), ref_probs, atol=1e-2, rtol=1e-2)
    assert jnp.allclose(value.astype(jnp.float32), ref_value, atol=1e-2, rtol=1e-2)
    assert jnp.allclose(jnp.sum(probs.astype(jnp.float32), axis=1), 1.0, atol=1e-2)

    # Multi-step grid path (pipelined, batch split across TCs on v7x).
    B2 = 200
    key, kx2 = jax.random.split(key)
    x2 = jax.random.normal(kx2, (B2, INPUT_DIMS), jnp.float32)
    probs2, value2 = actor_critic_forward(x2, w_slab, b_slab,
                                          dims=dims, n_actions=n_actions)
    jax.block_until_ready((probs2, value2))
    ref_probs2, ref_value2 = reference_forward_bf16(x2, params)
    assert probs2.shape == (B2, N_ACTIONS) and value2.shape == (B2, 1)
    assert jnp.allclose(probs2.astype(jnp.float32), ref_probs2, atol=1e-2, rtol=1e-2)
    assert jnp.allclose(value2.astype(jnp.float32), ref_value2, atol=1e-2, rtol=1e-2)

    print("KERNEL_OK")
</pallas_src>

<mosaic_0001>
module attributes {stable_mosaic.version = 11 : i64} {
  func.func @actor_critic_kernel(%arg0: i32, %arg1: memref<16x8xf32, #tpu.memory_space<vmem>>, %arg2: memref<4x128x128xbf16, #tpu.memory_space<vmem>>, %arg3: memref<4x128xf32, #tpu.memory_space<vmem>>, %arg4: memref<16x128xbf16, #tpu.memory_space<vmem>>) attributes {dimension_semantics = [#tpu.dimension_semantics<parallel>], iteration_bounds = array<i64: 1>, scalar_prefetch = 0 : i64, scratch_operands = 0 : i64, tpu.core_type = #tpu.core_type<tc>, window_params = [{transform_indices = @transform_0, window_bounds = array<i64: 16, 8>}, {pipeline_mode = #tpu.pipeline_mode<synchronous>, transform_indices = @transform_1, window_bounds = array<i64: 4, 128, 128>}, {pipeline_mode = #tpu.pipeline_mode<synchronous>, transform_indices = @transform_2, window_bounds = array<i64: 4, 128>}, {transform_indices = @transform_3, window_bounds = array<i64: 16, 128>}]} {
    %c0 = arith.constant 0 : index
    %c0_0 = arith.constant 0 : index
    %0 = vector.load %arg1[%c0, %c0_0] : memref<16x8xf32, #tpu.memory_space<vmem>>, vector<16x8xf32>
    %1 = arith.truncf %0 : vector<16x8xf32> to vector<16x8xbf16>
    %c0_1 = arith.constant 0 : index
    %c0_2 = arith.constant 0 : index
    %c0_3 = arith.constant 0 : index
    %2 = vector.load %arg2[%c0_1, %c0_2, %c0_3] : memref<4x128x128xbf16, #tpu.memory_space<vmem>>, vector<1x8x128xbf16>
    %3 = vector.shape_cast %2 : vector<1x8x128xbf16> to vector<8x128xbf16>
    %cst = arith.constant dense<0.000000e+00> : vector<16x128xf32>
    %4 = tpu.matmul %1, %3, %cst {dimension_numbers = #tpu.dot_dimension_numbers<[1], [0], [0], [1], [0, 0, 1, 1], [], []>} : vector<16x8xbf16>, vector<8x128xbf16>, vector<16x128xf32> -> vector<16x128xf32>
    %c0_4 = arith.constant 0 : index
    %c0_5 = arith.constant 0 : index
    %5 = vector.load %arg3[%c0_4, %c0_5] : memref<4x128xf32, #tpu.memory_space<vmem>>, vector<1x128xf32>
    %6 = vector.broadcast %5 : vector<1x128xf32> to vector<16x128xf32>
    %7 = arith.addf %4, %6 : vector<16x128xf32>
    %cst_6 = arith.constant 0.000000e+00 : f32
    %8 = vector.broadcast %cst_6 : f32 to vector<16x128xf32>
    %9 = arith.maximumf %7, %8 : vector<16x128xf32>
    %10 = arith.truncf %9 : vector<16x128xf32> to vector<16x128xbf16>
    %c1 = arith.constant 1 : index
    %c0_7 = arith.constant 0 : index
    %c0_8 = arith.constant 0 : index
    %11 = vector.load %arg2[%c1, %c0_7, %c0_8] : memref<4x128x128xbf16, #tpu.memory_space<vmem>>, vector<1x128x128xbf16>
    %12 = vector.shape_cast %11 : vector<1x128x128xbf16> to vector<128x128xbf16>
    %cst_9 = arith.constant dense<0.000000e+00> : vector<16x128xf32>
    %13 = tpu.matmul %10, %12, %cst_9 {dimension_numbers = #tpu.dot_dimension_numbers<[1], [0], [0], [1], [0, 0, 1, 1], [], []>} : vector<16x128xbf16>, vector<128x128xbf16>, vector<16x128xf32> -> vector<16x128xf32>
    %c1_10 = arith.constant 1 : index
    %c0_11 = arith.constant 0 : index
    %14 = vector.load %arg3[%c1_10, %c0_11] : memref<4x128xf32, #tpu.memory_space<vmem>>, vector<1x128xf32>
    %15 = vector.broadcast %14 : vector<1x128xf32> to vector<16x128xf32>
    %16 = arith.addf %13, %15 : vector<16x128xf32>
    %cst_12 = arith.constant 0.000000e+00 : f32
    %17 = vector.broadcast %cst_12 : f32 to vector<16x128xf32>
    %18 = arith.maximumf %16, %17 : vector<16x128xf32>
    %19 = arith.truncf %18 : vector<16x128xf32> to vector<16x128xbf16>
    %c2 = arith.constant 2 : index
    %c0_13 = arith.constant 0 : index
    %c0_14 = arith.constant 0 : index
    %20 = vector.load %arg2[%c2, %c0_13, %c0_14] : memref<4x128x128xbf16, #tpu.memory_space<vmem>>, vector<1x128x128xbf16>
    %21 = vector.shape_cast %20 : vector<1x128x128xbf16> to vector<128x128xbf16>
    %cst_15 = arith.constant dense<0.000000e+00> : vector<16x128xf32>
    %22 = tpu.matmul %19, %21, %cst_15 {dimension_numbers = #tpu.dot_dimension_numbers<[1], [0], [0], [1], [0, 0, 1, 1], [], []>} : vector<16x128xbf16>, vector<128x128xbf16>, vector<16x128xf32> -> vector<16x128xf32>
    %c2_16 = arith.constant 2 : index
    %c0_17 = arith.constant 0 : index
    %23 = vector.load %arg3[%c2_16, %c0_17] : memref<4x128xf32, #tpu.memory_space<vmem>>, vector<1x128xf32>
    %24 = vector.broadcast %23 : vector<1x128xf32> to vector<16x128xf32>
    %25 = arith.addf %22, %24 : vector<16x128xf32>
    %cst_18 = arith.constant 0.000000e+00 : f32
    %26 = vector.broadcast %cst_18 : f32 to vector<16x128xf32>
    %27 = arith.maximumf %25, %26 : vector<16x128xf32>
    %28 = arith.truncf %27 : vector<16x128xf32> to vector<16x128xbf16>
    %c3 = arith.constant 3 : index
    %c0_19 = arith.constant 0 : index
    %c0_20 = arith.constant 0 : index
    %29 = vector.load %arg2[%c3, %c0_19, %c0_20] : memref<4x128x128xbf16, #tpu.memory_space<vmem>>, vector<1x128x128xbf16>
    %30 = vector.shape_cast %29 : vector<1x128x128xbf16> to vector<128x128xbf16>
    %cst_21 = arith.constant dense<0.000000e+00> : vector<16x128xf32>
    %31 = tpu.matmul %28, %30, %cst_21 {dimension_numbers = #tpu.dot_dimension_numbers<[1], [0], [0], [1], [0, 0, 1, 1], [], []>} : vector<16x128xbf16>, vector<128x128xbf16>, vector<16x128xf32> -> vector<16x128xf32>
    %c3_22 = arith.constant 3 : index
    %c0_23 = arith.constant 0 : index
    %32 = vector.load %arg3[%c3_22, %c0_23] : memref<4x128xf32, #tpu.memory_space<vmem>>, vector<1x128xf32>
    %33 = vector.broadcast %32 : vector<1x128xf32> to vector<16x128xf32>
    %34 = arith.addf %31, %33 : vector<16x128xf32>
    %35 = tpu.iota {dimensions = array<i32: 1>} : vector<16x128xi32>
    %c4_i32 = arith.constant 4 : i32
    %36 = vector.broadcast %c4_i32 : i32 to vector<16x128xi32>
    %37 = arith.cmpi slt, %35, %36 : vector<16x128xi32>
    %cst_24 = arith.constant -1.000000e+30 : f32
    %38 = vector.broadcast %cst_24 : f32 to vector<16x128xf32>
    %39 = arith.select %37, %34, %38 : vector<16x128xi1>, vector<16x128xf32>
    %cst_25 = arith.constant dense<0xFF800000> : vector<16xf32>
    %40 = vector.multi_reduction <maximumf>, %39, %cst_25 [1] : vector<16x128xf32> to vector<16xf32>
    %41 = vector.shape_cast %40 : vector<16xf32> to vector<16x1xf32>
    %42 = vector.broadcast %41 : vector<16x1xf32> to vector<16x128xf32>
    %43 = arith.subf %39, %42 : vector<16x128xf32>
    %44 = math.exp %43 : vector<16x128xf32>
    %cst_26 = arith.constant dense<0.000000e+00> : vector<16xf32>
    %45 = vector.multi_reduction <add>, %44, %cst_26 [1] : vector<16x128xf32> to vector<16xf32>
    %46 = vector.shape_cast %45 : vector<16xf32> to vector<16x1xf32>
    %47 = vector.broadcast %46 : vector<16x1xf32> to vector<16x128xf32>
    %48 = arith.divf %44, %47 : vector<16x128xf32>
    %c4_i32_27 = arith.constant 4 : i32
    %49 = vector.broadcast %c4_i32_27 : i32 to vector<16x128xi32>
    %50 = arith.cmpi eq, %35, %49 : vector<16x128xi32>
    %51 = arith.select %50, %34, %48 : vector<16x128xi1>, vector<16x128xf32>
    %52 = arith.truncf %51 : vector<16x128xf32> to vector<16x128xbf16>
    %c0_28 = arith.constant 0 : index
    %c0_29 = arith.constant 0 : index
    %53 = vector.load %arg4[%c0_28, %c0_29] : memref<16x128xbf16, #tpu.memory_space<vmem>>, vector<16x128xbf16>
    tpu.vector_store %arg4[%c0_28, %c0_29], %52 {strides = array<i32>} : memref<16x128xbf16, #tpu.memory_space<vmem>>, vector<16x128xbf16>,
    return
  }
  func.func @transform_0(%arg0: i32) -> (i32, i32) {
    %c0_i32 = arith.constant 0 : i32
    %c0_i32_0 = arith.constant 0 : i32
    return %arg0, %c0_i32 : i32, i32
  }
  func.func @transform_1(%arg0: i32) -> (i32, i32, i32) {
    %c0_i32 = arith.constant 0 : i32
    %c0_i32_0 = arith.constant 0 : i32
    %c0_i32_1 = arith.constant 0 : i32
    %c0_i32_2 = arith.constant 0 : i32
    return %c0_i32, %c0_i32_0, %c0_i32_1 : i32, i32, i32
  }
  func.func @transform_2(%arg0: i32) -> (i32, i32) {
    %c0_i32 = arith.constant 0 : i32
    %c0_i32_0 = arith.constant 0 : i32
    %c0_i32_1 = arith.constant 0 : i32
    return %c0_i32, %c0_i32_0 : i32, i32
  }
  func.func @transform_3(%arg0: i32) -> (i32, i32) {
    %c0_i32 = arith.constant 0 : i32
    %c0_i32_0 = arith.constant 0 : i32
    return %arg0, %c0_i32 : i32, i32
  }
}

</mosaic_0001>

<llo_original>
// kernel: actor_critic_forward.1
$region0: #{actor_critic_forward.1}
  #allocation0 [shape = 'u32[]', space=smem, size = 0x4, offset = 0x4, fixed_abs, tag = 'smem constant byte address 0x4 - core index']
  #allocation1 [shape = 'u32[144,128]{1,0:T(1,128)}', space=vmem, size = 0x12000, scoped, tag = 'internal scratch']
  %s0 = inlined_call_operand.vmem [shape: f32[16,8], index: 0, kind: input, shape index: {}]
  %s1 = inlined_call_operand.hbm [shape: bf16[4,128,128], index: 1, kind: input, shape index: {}]
  %s2 = inlined_call_operand.vmem [shape: f32[4,128], index: 2, kind: input, shape index: {}]
  %s3 = inlined_call_operand.vmem [shape: bf16[16,128], index: 3, kind: output, shape index: {}]
  %s4 = sld [smem:[#allocation0]]
  $region26: #{actor_critic_forward.1} parent=0
    _
  %s6 = ssub.s32 1, %s4
  %s7 = scalar_select 0, %s6, %s4
  $region1: #{actor_critic_forward.1} parent=0
    #allocation2 [shape = 'u8[131072]{0}', space=vmem, size = 0x20000, scoped, tag = 'input window, operand 1, single buffered']
    #allocation3 [shape = 's32[1]{0}', space=sflag, size = 0x4, scoped, tag = 'scoped memory for actor_critic_forward.1']
    %8 = vsyncpa [#allocation3], 0
    // Predicated region
    $region2: #{actor_critic_forward.1} parent=1 // pred_check
      _
    $region3: #{actor_critic_forward.1} parent=1 // pred_check_branch
      %10 = sbr.rel (0) target = $region5
    $region4: #{actor_critic_forward.1} parent=1 // pred_region
      _
    $region5: #{actor_critic_forward.1} parent=1 // pred_fallthru
      _
    // Predicated region
    $region6: #{actor_critic_forward.1} parent=1 // pred_check
      _
    $region7: #{actor_critic_forward.1} parent=1 // pred_check_branch
      %12 = sbr.rel (0) target = $region9
    $region8: #{actor_critic_forward.1} parent=1 // pred_region
      %s14 = ssub.s32 4096, 4096
      %15 = vsyncadd [#allocation3], %s14
      %s16 = sshll.u32 [#allocation2], 4
      %s17 = int_to_ptr.vmem [resolvable:$true] %s16
      %22 = dma.hbm_to_vmem [thread:$0]  %s1, 4096, %s17, [#allocation3], 64, 64, 4
    $region9: #{actor_critic_forward.1} parent=1 // pred_fallthru
      _
    // Predicated region
    $region10: #{actor_critic_forward.1} parent=1 // pred_check
      _
    $region11: #{actor_critic_forward.1} parent=1 // pred_check_branch
      %24 = sbr.rel (0) target = $region13
    $region12: #{actor_critic_forward.1} parent=1 // pred_region
      _
    $region13: #{actor_critic_forward.1} parent=1 // pred_fallthru
      _
    // Predicated region
    $region14: #{actor_critic_forward.1} parent=1 // pred_check
      _
    $region15: #{actor_critic_forward.1} parent=1 // pred_check_branch
      %26 = sbr.rel (0) target = $region17
    $region16: #{actor_critic_forward.1} parent=1 // pred_region
      %27 = dma.done [#allocation3], 4096
    $region17: #{actor_critic_forward.1} parent=1 // pred_fallthru
      _
    %v29 = vld [vmem:[%s0] sm:$0xff]
    %v30 = vld [vmem:[%s0 + $0x8] sm:$0xff]
    %v31 = vpack.c.bf16 %v30, %v29
    %v32 = vld [vmem:[#allocation2] sm:$0xf]
    %v33 = vld [vmem:[%s2] sm:$0x1]
    %v34 = vlaneseq
    %v35 = vshrl.u32 %v34, 7
    %v36 = vsub.s32 0, %v35
    %v37 = vrot.slane %v33, %v36
    %vm38 = vcmask 64512
    %v40 = vsel %vm38, %v31, 0
    %vm42 = vcmask 1043456
    %v44 = vsel %vm42, %v32, 0
    %46 = vmatprep.subr.bf16.mxu0 0
    %47 = vmatpush1.bf16.msra.mxu0 %v44
    %48 = vmatprep.subr.bf16.mxu0 0
    %49 = vmatpush1.bf16.msra.mxu0 0
    %50 = vmatprep.subr.bf16.mxu0 0
    %51 = vmatpush1.bf16.msra.mxu0 0
    %52 = vmatprep.subr.bf16.mxu0 0
    %53 = vmatpush1.bf16.msra.mxu0 0
    %54 = vmatprep.subr.bf16.mxu0 0
    %55 = vmatpush1.bf16.msra.mxu0 0
    %56 = vmatprep.subr.bf16.mxu0 0
    %57 = vmatpush1.bf16.msra.mxu0 0
    %58 = vmatprep.subr.bf16.mxu0 0
    %59 = vmatpush1.bf16.msra.mxu0 0
    %60 = vmatprep.subr.bf16.mxu0 0
    %61 = vmatpush1.bf16.msra.mxu0 0
    %62 = vmatprep.subr.bf16.mxu0 0
    %63 = vmatpush1.bf16.msra.mxu0 0
    %64 = vmatprep.subr.bf16.mxu0 0
    %65 = vmatpush1.bf16.msra.mxu0 0
    %66 = vmatprep.subr.bf16.mxu0 0
    %67 = vmatpush1.bf16.msra.mxu0 0
    %68 = vmatprep.subr.bf16.mxu0 0
    %69 = vmatpush1.bf16.msra.mxu0 0
    %70 = vmatprep.subr.bf16.mxu0 0
    %71 = vmatpush1.bf16.msra.mxu0 0
    %72 = vmatprep.subr.bf16.mxu0 0
    %73 = vmatpush1.bf16.msra.mxu0 0
    %74 = vmatprep.subr.bf16.mxu0 0
    %75 = vmatpush1.bf16.msra.mxu0 0
    %76 = vmatprep.subr.bf16.mxu0 0
    %77 = vmatpush1.bf16.msra.mxu0 0
    %78 = vmatprep.mubr.bf16.mxu0 0
    %79 = vmatmul.mubr.bf16.gmra.mrb[0].mxu0 %v40
    %v80 = vpop.f32.mrb[0].mxu0
    %v81 = vadd.f32 %v37, %v80
    %v82 = vpop.f32.mrb[0].mxu0
    %v83 = vpop.f32.mrb[0].mxu0
    %v84 = vadd.f32 %v37, %v83
    %v85 = vpop.f32.mrb[0].mxu0
    %86 = vdwg.mxu0
    %v87 = vmax.f32 %v81, 0.0
    %v88 = vmax.f32 %v84, 0.0
    %v89 = vpack.c.bf16 %v88, %v87
    %s90 = scalar_lea.vmem [#allocation2], 64
    %v91 = vld [vmem:[%s90] sm:$0xf]
    %v92 = vld [vmem:[%s90 + $0x4] sm:$0xf]
    %v93 = vld [vmem:[%s90 + $0x8] sm:$0xf]
    %v94 = vld [vmem:[%s90 + $0xc] sm:$0xf]
    %v95 = vld [vmem:[%s90 + $0x10] sm:$0xf]
    %v96 = vld [vmem:[%s90 + $0x14] sm:$0xf]
    %v97 = vld [vmem:[%s90 + $0x18] sm:$0xf]
    %v98 = vld [vmem:[%s90 + $0x1c] sm:$0xf]
    %v99 = vld [vmem:[%s90 + $0x20] sm:$0xf]
    %v100 = vld [vmem:[%s90 + $0x24] sm:$0xf]
    %v101 = vld [vmem:[%s90 + $0x28] sm:$0xf]
    %v102 = vld [vmem:[%s90 + $0x2c] sm:$0xf]
    %v103 = vld [vmem:[%s90 + $0x30] sm:$0xf]
    %v104 = vld [vmem:[%s90 + $0x34] sm:$0xf]
    %v105 = vld [vmem:[%s90 + $0x38] sm:$0xf]
    %v106 = vld [vmem:[%s90 + $0x3c] sm:$0xf]
    %v107 = vld [vmem:[%s2 + $0x1] sm:$0x1]
    %v108 = vlaneseq
    %v109 = vshrl.u32 %v108, 7
    %v110 = vsub.s32 0, %v109
    %v111 = vrot.slane %v107, %v110
    %v128 = vunpack.c.l.b16 %v91
    %v129 = vunpack.c.l.b16 %v92
    %v130 = vunpack.c.l.b16 %v93
    %v131 = vunpack.c.l.b16 %v94
    %v132 = vunpack.c.l.b16 %v95
    %v133 = vunpack.c.l.b16 %v96
    %v134 = vunpack.c.l.b16 %v97
    %v135 = vunpack.c.l.b16 %v98
    %v136 = vunpack.c.l.b16 %v99
    %v137 = vunpack.c.l.b16 %v100
    %v138 = vunpack.c.l.b16 %v101
    %v139 = vunpack.c.l.b16 %v102
    %v140 = vunpack.c.l.b16 %v103
    %v141 = vunpack.c.l.b16 %v104
    %v142 = vunpack.c.l.b16 %v105
    %v143 = vunpack.c.l.b16 %v106
    %v144 = vpack.c.b16 %v129, %v128
    %v145 = vpack.c.b16 %v131, %v130
    %v146 = vpack.c.b16 %v133, %v132
    %v147 = vpack.c.b16 %v135, %v134
    %v148 = vpack.c.b16 %v137, %v136
    %v149 = vpack.c.b16 %v139, %v138
    %v150 = vpack.c.b16 %v141, %v140
    %v151 = vpack.c.b16 %v143, %v142
    %160 = vmatprep.subr.bf16.mxu0 0
    %161 = vmatpush1.bf16.msra.mxu0 %v144
    %162 = vmatprep.subr.bf16.mxu0 0
    %163 = vmatpush1.bf16.msra.mxu0 %v145
    %164 = vmatprep.subr.bf16.mxu0 0
    %165 = vmatpush1.bf16.msra.mxu0 %v146
    %166 = vmatprep.subr.bf16.mxu0 0
    %167 = vmatpush1.bf16.msra.mxu0 %v147
    %168 = vmatprep.subr.bf16.mxu0 0
    %169 = vmatpush1.bf16.msra.mxu0 %v148
    %170 = vmatprep.subr.bf16.mxu0 0
    %171 = vmatpush1.bf16.msra.mxu0 %v149
    %172 = vmatprep.subr.bf16.mxu0 0
    %173 = vmatpush1.bf16.msra.mxu0 %v150
    %174 = vmatprep.subr.bf16.mxu0 0
    %175 = vmatpush1.bf16.msra.mxu0 %v151
    %176 = vmatprep.subr.bf16.mxu0 0
    %177 = vmatpush1.bf16.msra.mxu0 0
    %178 = vmatprep.subr.bf16.mxu0 0
    %179 = vmatpush1.bf16.msra.mxu0 0
    %180 = vmatprep.subr.bf16.mxu0 0
    %181 = vmatpush1.bf16.msra.mxu0 0
    %182 = vmatprep.subr.bf16.mxu0 0
    %183 = vmatpush1.bf16.msra.mxu0 0
    %184 = vmatprep.subr.bf16.mxu0 0
    %185 = vmatpush1.bf16.msra.mxu0 0
    %186 = vmatprep.subr.bf16.mxu0 0
    %187 = vmatpush1.bf16.msra.mxu0 0
    %188 = vmatprep.subr.bf16.mxu0 0
    %189 = vmatpush1.bf16.msra.mxu0 0
    %190 = vmatprep.subr.bf16.mxu0 0
    %191 = vmatpush1.bf16.msra.mxu0 0
    %192 = vmatprep.mubr.bf16.mxu0 0
    %193 = vmatmul.mubr.bf16.gmra.mrb[0].mxu0 %v89
    %v194 = vpop.f32.mrb[0].mxu0
    %v195 = vadd.f32 %v111, %v194
    %v196 = vpop.f32.mrb[0].mxu0
    %v197 = vpop.f32.mrb[0].mxu0
    %v198 = vadd.f32 %v111, %v197
    %v199 = vpop.f32.mrb[0].mxu0
    %200 = vdwg.mxu0
    %v201 = vmax.f32 %v195, 0.0
    %v202 = vmax.f32 %v198, 0.0
    %v203 = vpack.c.bf16 %v202, %v201
    %s204 = scalar_lea.vmem [#allocation2], 128
    %v205 = vld [vmem:[%s204] sm:$0xf]
    %v206 = vld [vmem:[%s204 + $0x4] sm:$0xf]
    %v207 = vld [vmem:[%s204 + $0x8] sm:$0xf]
    %v208 = vld [vmem:[%s204 + $0xc] sm:$0xf]
    %v209 = vld [vmem:[%s204 + $0x10] sm:$0xf]
    %v210 = vld [vmem:[%s204 + $0x14] sm:$0xf]
    %v211 = vld [vmem:[%s204 + $0x18] sm:$0xf]
    %v212 = vld [vmem:[%s204 + $0x1c] sm:$0xf]
    %v213 = vld [vmem:[%s204 + $0x20] sm:$0xf]
    %v214 = vld [vmem:[%s204 + $0x24] sm:$0xf]
    %v215 = vld [vmem:[%s204 + $0x28] sm:$0xf]
    %v216 = vld [vmem:[%s204 + $0x2c] sm:$0xf]
    %v217 = vld [vmem:[%s204 + $0x30] sm:$0xf]
    %v218 = vld [vmem:[%s204 + $0x34] sm:$0xf]
    %v219 = vld [vmem:[%s204 + $0x38] sm:$0xf]
    %v220 = vld [vmem:[%s204 + $0x3c] sm:$0xf]
    %v221 = vld [vmem:[%s2 + $0x2] sm:$0x1]
    %v222 = vlaneseq
    %v223 = vshrl.u32 %v222, 7
    %v224 = vsub.s32 0, %v223
    %v225 = vrot.slane %v221, %v224
    %v242 = vunpack.c.l.b16 %v205
    %v243 = vunpack.c.l.b16 %v206
    %v244 = vunpack.c.l.b16 %v207
    %v245 = vunpack.c.l.b16 %v208
    %v246 = vunpack.c.l.b16 %v209
    %v247 = vunpack.c.l.b16 %v210
    %v248 = vunpack.c.l.b16 %v211
    %v249 = vunpack.c.l.b16 %v212
    %v250 = vunpack.c.l.b16 %v213
    %v251 = vunpack.c.l.b16 %v214
    %v252 = vunpack.c.l.b16 %v215
    %v253 = vunpack.c.l.b16 %v216
    %v254 = vunpack.c.l.b16 %v217
    %v255 = vunpack.c.l.b16 %v218
    %v256 = vunpack.c.l.b16 %v219
    %v257 = vunpack.c.l.b16 %v220
    %v258 = vpack.c.b16 %v243, %v242
    %v259 = vpack.c.b16 %v245, %v244
    %v260 = vpack.c.b16 %v247, %v246
    %v261 = vpack.c.b16 %v249, %v248
    %v262 = vpack.c.b16 %v251, %v250
    %v263 = vpack.c.b16 %v253, %v252
    %v264 = vpack.c.b16 %v255, %v254
    %v265 = vpack.c.b16 %v257, %v256
    %274 = vmatprep.subr.bf16.mxu0 0
    %275 = vmatpush1.bf16.msra.mxu0 %v258
    %276 = vmatprep.subr.bf16.mxu0 0
    %277 = vmatpush1.bf16.msra.mxu0 %v259
    %278 = vmatprep.subr.bf16.mxu0 0
    %279 = vmatpush1.bf16.msra.mxu0 %v260
    %280 = vmatprep.subr.bf16.mxu0 0
    %281 = vmatpush1.bf16.msra.mxu0 %v261
    %282 = vmatprep.subr.bf16.mxu0 0
    %283 = vmatpush1.bf16.msra.mxu0 %v262
    %284 = vmatprep.subr.bf16.mxu0 0
    %285 = vmatpush1.bf16.msra.mxu0 %v263
    %286 = vmatprep.subr.bf16.mxu0 0
    %287 = vmatpush1.bf16.msra.mxu0 %v264
    %288 = vmatprep.subr.bf16.mxu0 0
    %289 = vmatpush1.bf16.msra.mxu0 %v265
    %290 = vmatprep.subr.bf16.mxu0 0
    %291 = vmatpush1.bf16.msra.mxu0 0
    %292 = vmatprep.subr.bf16.mxu0 0
    %293 = vmatpush1.bf16.msra.mxu0 0
    %294 = vmatprep.subr.bf16.mxu0 0
    %295 = vmatpush1.bf16.msra.mxu0 0
    %296 = vmatprep.subr.bf16.mxu0 0
    %297 = vmatpush1.bf16.msra.mxu0 0
    %298 = vmatprep.subr.bf16.mxu0 0
    %299 = vmatpush1.bf16.msra.mxu0 0
    %300 = vmatprep.subr.bf16.mxu0 0
    %301 = vmatpush1.bf16.msra.mxu0 0
    %302 = vmatprep.subr.bf16.mxu0 0
    %303 = vmatpush1.bf16.msra.mxu0 0
    %304 = vmatprep.subr.bf16.mxu0 0
    %305 = vmatpush1.bf16.msra.mxu0 0
    %306 = vmatprep.mubr.bf16.mxu0 0
    %307 = vmatmul.mubr.bf16.gmra.mrb[0].mxu0 %v203
    %v308 = vpop.f32.mrb[0].mxu0
    %v309 = vadd.f32 %v225, %v308
    %v310 = vpop.f32.mrb[0].mxu0
    %v311 = vpop.f32.mrb[0].mxu0
    %v312 = vadd.f32 %v225, %v311
    %v313 = vpop.f32.mrb[0].mxu0
    %314 = vdwg.mxu0
    %v315 = vmax.f32 %v309, 0.0
    %v316 = vmax.f32 %v312, 0.0
    %v317 = vpack.c.bf16 %v316, %v315
    %s318 = scalar_lea.vmem [#allocation2], 192
    %v319 = vld [vmem:[%s318] sm:$0xf]
    %v320 = vld [vmem:[%s318 + $0x4] sm:$0xf]
    %v321 = vld [vmem:[%s318 + $0x8] sm:$0xf]
    %v322 = vld [vmem:[%s318 + $0xc] sm:$0xf]
    %v323 = vld [vmem:[%s318 + $0x10] sm:$0xf]
    %v324 = vld [vmem:[%s318 + $0x14] sm:$0xf]
    %v325 = vld [vmem:[%s318 + $0x18] sm:$0xf]
    %v326 = vld [vmem:[%s318 + $0x1c] sm:$0xf]
    %v327 = vld [vmem:[%s318 + $0x20] sm:$0xf]
    %v328 = vld [vmem:[%s318 + $0x24] sm:$0xf]
    %v329 = vld [vmem:[%s318 + $0x28] sm:$0xf]
    %v330 = vld [vmem:[%s318 + $0x2c] sm:$0xf]
    %v331 = vld [vmem:[%s318 + $0x30] sm:$0xf]
    %v332 = vld [vmem:[%s318 + $0x34] sm:$0xf]
    %v333 = vld [vmem:[%s318 + $0x38] sm:$0xf]
    %v334 = vld [vmem:[%s318 + $0x3c] sm:$0xf]
    %v335 = vld [vmem:[%s2 + $0x3] sm:$0x1]
    %v336 = vlaneseq
    %v337 = vshrl.u32 %v336, 7
    %v338 = vsub.s32 0, %v337
    %v339 = vrot.slane %v335, %v338
    %v356 = vunpack.c.l.b16 %v319
    %v357 = vunpack.c.l.b16 %v320
    %v358 = vunpack.c.l.b16 %v321
    %v359 = vunpack.c.l.b16 %v322
    %v360 = vunpack.c.l.b16 %v323
    %v361 = vunpack.c.l.b16 %v324
    %v362 = vunpack.c.l.b16 %v325
    %v363 = vunpack.c.l.b16 %v326
    %v364 = vunpack.c.l.b16 %v327
    %v365 = vunpack.c.l.b16 %v328
    %v366 = vunpack.c.l.b16 %v329
    %v367 = vunpack.c.l.b16 %v330
    %v368 = vunpack.c.l.b16 %v331
    %v369 = vunpack.c.l.b16 %v332
    %v370 = vunpack.c.l.b16 %v333
    %v371 = vunpack.c.l.b16 %v334
    %v372 = vpack.c.b16 %v357, %v356
    %v373 = vpack.c.b16 %v359, %v358
    %v374 = vpack.c.b16 %v361, %v360
    %v375 = vpack.c.b16 %v363, %v362
    %v376 = vpack.c.b16 %v365, %v364
    %v377 = vpack.c.b16 %v367, %v366
    %v378 = vpack.c.b16 %v369, %v368
    %v379 = vpack.c.b16 %v371, %v370
    %388 = vmatprep.subr.bf16.mxu0 0
    %389 = vmatpush1.bf16.msra.mxu0 %v372
    %390 = vmatprep.subr.bf16.mxu0 0
    %391 = vmatpush1.bf16.msra.mxu0 %v373
    %392 = vmatprep.subr.bf16.mxu0 0
    %393 = vmatpush1.bf16.msra.mxu0 %v374
    %394 = vmatprep.subr.bf16.mxu0 0
    %395 = vmatpush1.bf16.msra.mxu0 %v375
    %396 = vmatprep.subr.bf16.mxu0 0
    %397 = vmatpush1.bf16.msra.mxu0 %v376
    %398 = vmatprep.subr.bf16.mxu0 0
    %399 = vmatpush1.bf16.msra.mxu0 %v377
    %400 = vmatprep.subr.bf16.mxu0 0
    %401 = vmatpush1.bf16.msra.mxu0 %v378
    %402 = vmatprep.subr.bf16.mxu0 0
    %403 = vmatpush1.bf16.msra.mxu0 %v379
    %404 = vmatprep.subr.bf16.mxu0 0
    %405 = vmatpush1.bf16.msra.mxu0 0
    %406 = vmatprep.subr.bf16.mxu0 0
    %407 = vmatpush1.bf16.msra.mxu0 0
    %408 = vmatprep.subr.bf16.mxu0 0
    %409 = vmatpush1.bf16.msra.mxu0 0
    %410 = vmatprep.subr.bf16.mxu0 0
    %411 = vmatpush1.bf16.msra.mxu0 0
    %412 = vmatprep.subr.bf16.mxu0 0
    %413 = vmatpush1.bf16.msra.mxu0 0
    %414 = vmatprep.subr.bf16.mxu0 0
    %415 = vmatpush1.bf16.msra.mxu0 0
    %416 = vmatprep.subr.bf16.mxu0 0
    %417 = vmatpush1.bf16.msra.mxu0 0
    %418 = vmatprep.subr.bf16.mxu0 0
    %419 = vmatpush1.bf16.msra.mxu0 0
    %420 = vmatprep.mubr.bf16.mxu0 0
    %421 = vmatmul.mubr.bf16.gmra.mrb[0].mxu0 %v317
    %v422 = vpop.f32.mrb[0].mxu0
    %v423 = vadd.f32 %v339, %v422
    %v424 = vpop.f32.mrb[0].mxu0
    %v425 = vpop.f32.mrb[0].mxu0
    %v426 = vadd.f32 %v339, %v425
    %v427 = vpop.f32.mrb[0].mxu0
    %428 = vdwg.mxu0
    %v429 = vlaneseq
    %v430 = vand.u32 %v429, 127
    %vm431 = vcmp.lt.s32.totalorder %v430, 4
    %v432 = vsel %vm431, %v423, -1e+30
    %v433 = vsel %vm431, %v426, -1e+30
    %434 = vmax.xlane.f32.xlu0 %v432
    %v435 = vpop.xlane.xlu0 %434
    %436 = vmax.xlane.f32.xlu0 %v433
    %v437 = vpop.xlane.xlu0 %436
    %v438 = vsub.f32 %v432, %v435
    %v439 = vsub.f32 %v433, %v437
    %v440 = vmul.f32 %v438, 1.442695
    %v441 = vpow.pop %v440
    %v442 = vmul.f32 %v439, 1.442695
    %v443 = vpow.pop %v442
    %444 = vadd.xlane.f32.xlu0 %v441
    %v445 = vpop.xlane.xlu0 %444
    %446 = vadd.xlane.f32.xlu0 %v443
    %v447 = vpop.xlane.xlu0 %446
    %v448 = vrcp.pop %v445
    %v449 = vmul.f32 %v441, %v448
    %v450 = vrcp.pop %v447
    %v451 = vmul.f32 %v443, %v450
    %vm452 = vcmp.eq.s32.totalorder %v430, 4
    %v453 = vsel %vm452, %v423, %v449
    %v454 = vsel %vm452, %v426, %v451
    %v455 = vpack.c.bf16 %v454, %v453
    %v457 = vunpack.c.l.b16 %v455
    %v458 = vunpack.c.h.b16 %v455
    %v459 = vpack.c.b16 %v457, %v457
    %v460 = vpack.c.b16 %v458, %v458
    %463 = vst [vmem:[%s3] sm:$0xf] %v459
    %464 = vst [vmem:[%s3 + $0x4] sm:$0xf] %v460
    // Predicated region
    $region18: #{actor_critic_forward.1} parent=1 // pred_check
      _
    $region19: #{actor_critic_forward.1} parent=1 // pred_check_branch
      %466 = sbr.rel (0) target = $region21
    $region20: #{actor_critic_forward.1} parent=1 // pred_region
      _
    $region21: #{actor_critic_forward.1} parent=1 // pred_fallthru
      _
    // Predicated region
    $region22: #{actor_critic_forward.1} parent=1 // pred_check
      _
    $region23: #{actor_critic_forward.1} parent=1 // pred_check_branch
      %468 = sbr.rel (0) target = $region25
    $region24: #{actor_critic_forward.1} parent=1 // pred_region
      _
    $region25: #{actor_critic_forward.1} parent=1 // pred_fallthru
      _
    %469 = vsyncpa [#allocation3], 1

</llo_original>
